<compile_context>
chip_gen: v7x
topology: tpu7x:2x2x1
jax: 0.10.0
libtpu: 0.0.40
codegen_flags: <defaults>
</compile_context>

<pallas_src>
import functools

import jax
import jax.numpy as jnp
from jax.experimental import pallas as pl
from jax.experimental.pallas import tpu as pltpu


# ------------------------------------------------------------------ kernel ---
def _copy_kernel(x_ref, o_ref):
    # Identity hot path: load the VMEM tile and store it back out.
    o_ref[...] = x_ref[...]


# ----------------------------------------------------------------- helpers ---
def _resolve_size(size, total):
    """Mimic torch.Tensor.view size resolution (supports a single -1)."""
    if isinstance(size, int):
        size = (size,)
    size = tuple(int(s) for s in size)
    if -1 in size:
        known = 1
        for s in size:
            if s != -1:
                known *= s
        size = tuple(total // known if s == -1 else s for s in size)
    prod = 1
    for s in size:
        prod *= s
    assert prod == total, f"view size {size} incompatible with {total} elements"
    return size


def _staging_shape(total):
    """Pick a lane-dense 2D staging shape (rows, cols) with cols a large
    multiple of 128 dividing `total`. Returns None for ragged totals."""
    for cols in (8192, 4096, 2048, 1024, 512, 256, 128):
        if total % cols == 0:
            return total // cols, cols
    return None


def _sublane_multiple(itemsize):
    """Sublane packing granularity per dtype width (8 f32, 16 bf16, 32 int8)."""
    if itemsize >= 4:
        return 8
    return 8 * (4 // itemsize)


@functools.lru_cache(maxsize=1)
def _vmem_capacity_bytes():
    """Best-effort per-core VMEM capacity query (None if unavailable)."""
    try:
        info = pltpu.get_tpu_info()
        cap = getattr(info, "vmem_capacity_bytes", None)
        return int(cap) if cap else None
    except Exception:
        return None


def _tiling_params():
    """(block_bytes_target, vmem_limit_bytes) tuned per TPU generation.

    in+out double-buffered = 4x block must stay well under the per-TC VMEM.
    """
    cap = _vmem_capacity_bytes()
    if cap is None:
        # Conservative fallback that fits every generation's scoped default.
        return 2 * 1024 * 1024, 32 * 1024 * 1024
    if cap <= 80 * 1024 * 1024:
        # v7x-class part: 64 MiB per-TC VMEM, ~3.2 TB/s HBM -> big blocks so
        # the ~0.35 us per-step overhead stays <~5% of the DMA time.
        return 8 * 1024 * 1024, 48 * 1024 * 1024
    # v5e / v6e class: 128 MiB VMEM; mem-bound curve is near-plateau at 1-4 MiB.
    return 4 * 1024 * 1024, 64 * 1024 * 1024


def _pick_row_tile(rows, cols, itemsize, block_target, sublane, min_steps=4):
    """Row-tile: ~block_target bytes, sublane-aligned, >=min_steps grid steps,
    preferring an even divisor of `rows` so every block is full-size."""
    bytes_per_row = cols * itemsize
    target = max(1, block_target // bytes_per_row)
    # Keep enough grid steps so "parallel" can shard across both v7x TCs.
    if rows >= min_steps * sublane:
        target = min(target, rows // min_steps)
    target = max(sublane, (target // sublane) * sublane)
    if target >= rows:
        return rows  # single full-extent block along rows
    # Prefer a tile that evenly divides rows (no ragged / masked last block).
    tr = target
    while tr >= sublane:
        if rows % tr == 0:
            return tr
        tr -= sublane
    return target  # fall back to a ragged last tile (pl.cdiv handles it)


# ----------------------------------------------------------------- pallas ---
def _pallas_copy_2d(x2d, donate):
    """Tiled, pipelined identity copy of a (rows, cols) array."""
    rows, cols = x2d.shape
    itemsize = jnp.dtype(x2d.dtype).itemsize
    block_target, vmem_limit = _tiling_params()
    sublane = _sublane_multiple(itemsize)

    tr = _pick_row_tile(rows, cols, itemsize, block_target, sublane)
    num_blocks = pl.cdiv(rows, tr)
    grid = (num_blocks,)
    nbytes = rows * cols * itemsize

    kwargs = {}
    if donate:
        # Only alias when the caller actually donates the buffer; otherwise
        # XLA's defensive copy would double the HBM traffic.
        kwargs["input_output_aliases"] = {0: 0}

    # TODO(synk): a v7x-only variant could keep both refs in HBM
    # (memory_space=pl.ANY) and issue chunked make_async_copy HBM->HBM,
    # removing the VMEM round-trip entirely.
    return pl.pallas_call(
        _copy_kernel,
        out_shape=jax.ShapeDtypeStruct((rows, cols), x2d.dtype),
        grid_spec=pl.GridSpec(
            grid=grid,
            in_specs=[pl.BlockSpec((tr, cols), lambda i: (i, 0))],
            out_specs=pl.BlockSpec((tr, cols), lambda i: (i, 0)),
        ),
        compiler_params=pltpu.CompilerParams(
            # Independent copy tiles: shard across TensorCores when >1 step.
            dimension_semantics=("parallel",) if num_blocks > 1 else ("arbitrary",),
            vmem_limit_bytes=vmem_limit,
        ),
        # Pure mem-bound op: 1x read + 1x write, no flops.
        cost_estimate=pl.CostEstimate(
            flops=0, transcendentals=0, bytes_accessed=2 * nbytes
        ),
        **kwargs,
    )(x2d)


# ----------------------------------------------------------------- wrapper ---
def view_pallas(x, size, *, force_copy=False, donate=False,
                min_copy_bytes=1 << 20):
    """Pallas-backed equivalent of `x.view(size)` (PyTorch semantics).

    Default path is metadata-only (no kernel) — a view costs nothing.
    `force_copy=True` materializes the result through the tiled copy kernel,
    but only for tensors larger than `min_copy_bytes` (launch overhead dwarfs
    the copy for tiny tensors).
    """
    total = x.size
    out_size = _resolve_size(size, total)

    nbytes = total * jnp.dtype(x.dtype).itemsize
    if not force_copy or nbytes < min_copy_bytes:
        # Fast path: a view is metadata-only; no HBM traffic, no kernel launch.
        return jnp.reshape(x, out_size)

    staged = _staging_shape(total)
    if staged is None:
        # Ragged total (not a multiple of 128): skip the kernel, just reshape.
        # TODO(synk): could pad to a 128-multiple and copy the padded slab.
        return jnp.reshape(x, out_size)

    rows, cols = staged
    x2d = jnp.reshape(x, (rows, cols))
    copied = _pallas_copy_2d(x2d, donate)
    # Final shape change is metadata-only glue, exactly like torch .view().
    return jnp.reshape(copied, out_size)


class View:
    """JAX/Pallas port of the PyTorch View module (for sequential usage)."""

    def __init__(self, size):
        self.size = size

    def __call__(self, tensor):
        # A view is metadata-only: default to the zero-cost path.
        return view_pallas(tensor, self.size)


if __name__ == "__main__":
    key = jax.random.PRNGKey(0)

    # NCHW input consistent with the robotics encoders that use View:
    # (batch=2, channels=4, spatial=16x16) -> flatten per-batch sample.
    x = jax.random.normal(key, (2, 4, 16, 16), dtype=jnp.float32)
    size = (-1, 4 * 16 * 16)
    view = View(size)

    # Default (metadata-only) path used by the module.
    out_fast = jax.block_until_ready(view(x))
    # Exercise the Pallas copy kernel on the small input (size gate overridden).
    out_small = jax.block_until_ready(
        view_pallas(x, size, force_copy=True, min_copy_bytes=0))

    ref = jnp.reshape(x, size)
    assert out_fast.shape == (2, 1024), out_fast.shape
    assert out_small.shape == (2, 1024), out_small.shape
    assert out_fast.dtype == x.dtype and out_small.dtype == x.dtype
    assert bool(jnp.all(out_fast == ref))
    assert bool(jnp.all(out_small == ref))

    # Also exercise the multi-block / dual-TC tiling path (~2 MiB, above gate).
    y = jax.random.normal(jax.random.PRNGKey(0), (2, 16, 128, 128),
                          dtype=jnp.float32)
    ysize = (-1, 128 * 128)
    out_big = jax.block_until_ready(view_pallas(y, ysize, force_copy=True))
    refy = jnp.reshape(y, ysize)
    assert out_big.shape == (32, 16384), out_big.shape
    assert bool(jnp.all(out_big == refy))

    print("KERNEL_OK")
</pallas_src>

<mosaic_0001>
module attributes {stable_mosaic.version = 11 : i64} {
  func.func @_copy_kernel(%arg0: i32, %arg1: memref<1x2048xf32, #tpu.memory_space<vmem>>, %arg2: memref<1x2048xf32, #tpu.memory_space<vmem>>) attributes {dimension_semantics = [#tpu.dimension_semantics<arbitrary>], iteration_bounds = array<i64: 1>, scalar_prefetch = 0 : i64, scratch_operands = 0 : i64, tpu.core_type = #tpu.core_type<tc>, window_params = [{transform_indices = @transform_0, window_bounds = array<i64: 1, 2048>}, {transform_indices = @transform_1, window_bounds = array<i64: 1, 2048>}]} {
    %c0 = arith.constant 0 : index
    %c0_0 = arith.constant 0 : index
    %0 = vector.load %arg1[%c0, %c0_0] : memref<1x2048xf32, #tpu.memory_space<vmem>>, vector<1x2048xf32>
    %c0_1 = arith.constant 0 : index
    %c0_2 = arith.constant 0 : index
    %1 = vector.load %arg2[%c0_1, %c0_2] : memref<1x2048xf32, #tpu.memory_space<vmem>>, vector<1x2048xf32>
    tpu.vector_store %arg2[%c0_1, %c0_2], %0 {strides = array<i32>} : memref<1x2048xf32, #tpu.memory_space<vmem>>, vector<1x2048xf32>,
    return
  }
  func.func @transform_0(%arg0: i32) -> (i32, i32) {
    %c0_i32 = arith.constant 0 : i32
    %c0_i32_0 = arith.constant 0 : i32
    return %arg0, %c0_i32 : i32, i32
  }
  func.func @transform_1(%arg0: i32) -> (i32, i32) {
    %c0_i32 = arith.constant 0 : i32
    %c0_i32_0 = arith.constant 0 : i32
    return %arg0, %c0_i32 : i32, i32
  }
}

</mosaic_0001>

<llo_original>
// kernel: tpu_custom_call.1
$region0: #{tpu_custom_call.1}
  #allocation0 [shape = 'u32[]', space=smem, size = 0x4, offset = 0x4, fixed_abs, tag = 'smem constant byte address 0x4 - core index']
  #allocation1 [shape = 'u32[144,128]{1,0:T(1,128)}', space=vmem, size = 0x12000, scoped, tag = 'internal scratch']
  %s0 = inlined_call_operand.hbm [shape: f32[1,2048], index: 0, kind: input, shape index: {}]
  %s1 = inlined_call_operand.hbm [shape: f32[1,2048], index: 1, kind: output, shape index: {}]
  %s2 = sld [smem:[#allocation0]]
  $region18: #{tpu_custom_call.1} parent=0
    _
  %s4 = ssub.s32 1, %s2
  %s5 = scalar_select 0, %s4, %s2
  $region1: #{tpu_custom_call.1} parent=0
    #allocation2 [shape = 'u8[8192]{0}', space=vmem, size = 0x2000, scoped, tag = 'input window, operand 0, single buffered']
    #allocation3 [shape = 's32[1]{0}', space=sflag, size = 0x4, scoped, tag = 'scoped memory for tpu_custom_call.1']
    #allocation4 [shape = 's32[1]{0}', space=sflag, size = 0x4, scoped, tag = 'scoped memory for tpu_custom_call.1']
    #allocation5 [shape = 'u8[8192]{0}', space=vmem, size = 0x2000, scoped, tag = 'output window, operand 0, single buffered']
    %6 = vsyncpa [#allocation3], 0
    %7 = vsyncpa [#allocation4], 0
    // Predicated region
    $region2: #{tpu_custom_call.1} parent=1 // pred_check
      _
    $region3: #{tpu_custom_call.1} parent=1 // pred_check_branch
      %9 = sbr.rel (0) target = $region5
    $region4: #{tpu_custom_call.1} parent=1 // pred_region
      %s11 = ssub.s32 256, 256
      %12 = vsyncadd [#allocation3], %s11
      %s14 = sshll.u32 [#allocation2], 4
      %s15 = int_to_ptr.vmem [resolvable:$true] %s14
      %17 = dma.hbm_to_vmem [thread:$0]  %s0, 256, %s15, [#allocation3]
    $region5: #{tpu_custom_call.1} parent=1 // pred_fallthru
      _
    // Predicated region
    $region6: #{tpu_custom_call.1} parent=1 // pred_check
      _
    $region7: #{tpu_custom_call.1} parent=1 // pred_check_branch
      %19 = sbr.rel (0) target = $region9
    $region8: #{tpu_custom_call.1} parent=1 // pred_region
      %20 = dma.done [#allocation3], 256
    $region9: #{tpu_custom_call.1} parent=1 // pred_fallthru
      _
    %v21 = vld [vmem:[#allocation2] sm:$0xff]
    %v22 = vld [vmem:[#allocation2 + $0x8] sm:$0xff]
    %23 = vst [vmem:[#allocation5] sm:$0xff] %v21
    %24 = vst [vmem:[#allocation5 + $0x8] sm:$0xff] %v22
    // Predicated region
    $region10: #{tpu_custom_call.1} parent=1 // pred_check
      _
    $region11: #{tpu_custom_call.1} parent=1 // pred_check_branch
      %26 = sbr.rel (0) target = $region13
    $region12: #{tpu_custom_call.1} parent=1 // pred_region
      %s28 = ssub.s32 256, 256
      %29 = vsyncadd [#allocation4], %s28
      %s31 = sshll.u32 [#allocation5], 4
      %s32 = int_to_ptr.vmem [resolvable:$true] %s31
      %34 = dma.vmem_to_hbm [thread:$0]  %s32, 256, %s1, [#allocation4]
    $region13: #{tpu_custom_call.1} parent=1 // pred_fallthru
      _
    // Predicated region
    $region14: #{tpu_custom_call.1} parent=1 // pred_check
      _
    $region15: #{tpu_custom_call.1} parent=1 // pred_check_branch
      %36 = sbr.rel (0) target = $region17
    $region16: #{tpu_custom_call.1} parent=1 // pred_region
      %37 = dma.done [#allocation4], 256
    $region17: #{tpu_custom_call.1} parent=1 // pred_fallthru
      _
    %38 = vsyncpa [#allocation3], 1
    %39 = vsyncpa [#allocation4], 1

</llo_original>
